<compile_context>
chip_gen: v7x
topology: tpu7x:2x2x1
jax: 0.10.0
libtpu: 0.0.40
codegen_flags: <defaults>
</compile_context>

<pallas_src>
import numpy as np
import jax
import jax.numpy as jnp
from jax.experimental import pallas as pl
from jax.experimental.pallas import tpu as pltpu


# ----------------------------------------------------------------------------
# Pallas kernel: fused patch projection (bf16 matmul, f32 acc) + (pos+bias) add
# ----------------------------------------------------------------------------
def _proj_add_kernel(x_ref, w_ref, pb_ref, o_ref, acc_ref):
    # x_ref:  (TM, TK)    bf16 kept-patch tile
    # w_ref:  (TK, H_out) bf16 projection weight tile (resident when K whole)
    # pb_ref: (TM, H_out) bf16 per-row (position embedding + bias) tile
    # o_ref:  (TM, H_out) out dtype
    # acc_ref:(TM, H_out) f32 accumulator scratch (persists over the K axis)
    k = pl.program_id(1)

    @pl.when(k == 0)
    def _():
        acc_ref[...] = jnp.zeros_like(acc_ref)

    acc_ref[...] += jnp.dot(
        x_ref[...], w_ref[...], preferred_element_type=jnp.float32
    )

    @pl.when(k == pl.num_programs(1) - 1)
    def _():
        o_ref[...] = (
            acc_ref[...] + pb_ref[...].astype(jnp.float32)
        ).astype(o_ref.dtype)


def _round_up(x, m):
    return ((x + m - 1) // m) * m


def _default_tm():
    # 128-row LHS tiles for v5e's 4x128^2 MXU, 256 for v6e/v7x's 2x256^2 MXU.
    try:
        kind = jax.devices()[0].device_kind.lower()
    except Exception:
        return 128
    if ("v5e" in kind) or ("v5 lite" in kind) or ("v5litepod" in kind):
        return 128
    return 256


def patch_project_pallas(x_mk, w_kh, pb_mh, *, tm=None, tk=2048,
                         out_dtype=jnp.float32):
    """out[m] = x[m] @ w + addend[m], computed on the MXU in bf16 / f32-acc.

    x_mk:  (M, K) — kept patches, flattened over (batch, kept-seq), bf16/f32
    w_kh:  (K, H) — Conv3d weight reshaped/transposed, bf16/f32
    pb_mh: (M, H) — sincos pos-embed (per kept patch) + conv bias, bf16/f32
    returns (M, H) in out_dtype (f32 by default, matching the PyTorch module)
    """
    M, K = x_mk.shape
    K2, H = w_kh.shape
    assert K == K2 and pb_mh.shape == (M, H)

    tm = tm if tm is not None else _default_tm()

    # --- M tiling: >=2 tiles whenever possible so v7x's 2 TCs both get work ---
    if M >= 2 * tm:
        TM = tm
        M_pad = _round_up(M, TM)
    else:
        M_pad = _round_up(max(M, 16), 16)
        TM = max(M_pad // 2, 8)

    # --- H: full-dim blocks; lane-pad only when large and misaligned ---
    H_out = H if (H < 128 or H % 128 == 0) else _round_up(H, 128)

    # --- K tiling (reduction axis, innermost, "arbitrary"); zero-padded ---
    if K <= tk:
        TK, K_pad = K, K
    else:
        TK = tk                      # multiple of 128
        K_pad = _round_up(K, TK)

    # bf16 operands for the MXU (no-op casts if the wrapper already cast).
    x = x_mk.astype(jnp.bfloat16)
    w = w_kh.astype(jnp.bfloat16)
    pb = pb_mh.astype(jnp.bfloat16)
    if M_pad != M or K_pad != K:
        x = jnp.pad(x, ((0, M_pad - M), (0, K_pad - K)))
    if K_pad != K or H_out != H:
        w = jnp.pad(w, ((0, K_pad - K), (0, H_out - H)))
    if M_pad != M or H_out != H:
        pb = jnp.pad(pb, ((0, M_pad - M), (0, H_out - H)))

    grid = (M_pad // TM, K_pad // TK)

    # VMEM budget derived from the actual tiles (double-buffered inputs/output
    # + the f32 accumulator); capped below v7x's 64 MiB per-TC physical VMEM.
    vmem_needed = (
        2 * TM * TK * 2          # x tile, bf16, double-buffered
        + 2 * TK * H_out * 2     # w tile, bf16, double-buffered
        + 2 * TM * H_out * 2     # pb tile, bf16, double-buffered
        + 2 * TM * H_out * 4     # out tile, f32, double-buffered
        + TM * H_out * 4         # accumulator scratch
    )
    vmem_limit = int(min(max(2 * vmem_needed + (4 << 20), 32 << 20), 60 << 20))

    cost = pl.CostEstimate(
        flops=2 * M_pad * K_pad * H_out,
        transcendentals=0,
        bytes_accessed=(M_pad * K_pad * 2 + K_pad * H_out * 2
                        + M_pad * H_out * 2 + M_pad * H_out * 4),
    )

    out = pl.pallas_call(
        _proj_add_kernel,
        out_shape=jax.ShapeDtypeStruct((M_pad, H_out), out_dtype),
        grid_spec=pltpu.PrefetchScalarGridSpec(
            num_scalar_prefetch=0,
            grid=grid,
            in_specs=[
                pl.BlockSpec((TM, TK), lambda i, k: (i, k)),      # kept patches
                pl.BlockSpec((TK, H_out), lambda i, k: (k, 0)),   # weight
                pl.BlockSpec((TM, H_out), lambda i, k: (i, 0)),   # pos + bias
            ],
            out_specs=pl.BlockSpec((TM, H_out), lambda i, k: (i, 0)),
            scratch_shapes=[pltpu.VMEM((TM, H_out), jnp.float32)],
        ),
        compiler_params=pltpu.CompilerParams(
            dimension_semantics=("parallel", "arbitrary"),
            vmem_limit_bytes=vmem_limit,
        ),
        cost_estimate=cost,
    )(x, w, pb)

    if M_pad != M or H_out != H:
        out = out[:M, :H]
    return out


# ----------------------------------------------------------------------------
# Glue: rearrange, sincos position embeddings, random masking, CLS concat
# ----------------------------------------------------------------------------
def get_1d_sincos_pos_embed_from_grid(embed_dim, pos):
    # standard MAE sincos embedding
    assert embed_dim % 2 == 0
    omega = np.arange(embed_dim // 2, dtype=np.float64) / (embed_dim / 2.0)
    omega = 1.0 / 10000 ** omega
    out = np.einsum("m,d->md", pos.astype(np.float64), omega)
    emb = np.concatenate([np.sin(out), np.cos(out)], axis=1)
    return emb.astype(np.float32)


def rearrange_to_patches(x, patch_size):
    # (B, C, S, S, S) -> (B, N, C*P^3) with N = (S/P)^3 in (x, y, z) order,
    # K flattened (c, px, py, pz) — matches PyTorch Conv3d weight layout.
    B, C, S, _, _ = x.shape
    P = patch_size
    n = S // P
    x = x.reshape(B, C, n, P, n, P, n, P)
    x = jnp.transpose(x, (0, 2, 4, 6, 1, 3, 5, 7))   # (B, nx, ny, nz, C, P, P, P)
    return x.reshape(B, n * n * n, C * P * P * P)


def mri_mae_embeddings_forward(mri_values, params, cfg, noise):
    B = mri_values.shape[0]
    P = cfg["patch_size"]
    H = cfg["hidden_size"]
    N = cfg["num_patches"]

    # --- random masking indices first (argsort: no clean Pallas equivalent) ---
    len_keep = int(N * (1.0 - cfg["mask_ratio"]))
    ids_shuffle = jnp.argsort(noise, axis=1)
    ids_restore = jnp.argsort(ids_shuffle, axis=1)
    ids_keep = ids_shuffle[:, :len_keep]                              # (B, L)

    # --- patchify (bf16 cast folded into the transpose), gather kept rows ---
    patches = rearrange_to_patches(mri_values.astype(jnp.bfloat16), P)  # (B,N,K) bf16
    kept = jnp.take_along_axis(patches, ids_keep[:, :, None], axis=1)   # (B,L,K) bf16

    # --- per-row add term: sincos pos-embed for kept patches + conv bias ---
    pos_full = params["position_embeddings"]                          # (1, N+1, H) f32
    pos_plus_bias = (pos_full[0, 1:, :]
                     + params["proj_b"][None, :]).astype(jnp.bfloat16)  # (N, H) bf16
    kept_pb = pos_plus_bias[ids_keep]                                 # (B, L, H) bf16
    # TODO(synk): gather pos_plus_bias rows in-kernel via scalar-prefetched
    #             ids_keep against a VMEM-resident table to drop this stream.

    # --- fused projection + pos/bias add on the MXU (Pallas kernel) ---
    L = len_keep
    M = B * L
    K = kept.shape[-1]
    y = patch_project_pallas(
        kept.reshape(M, K), params["proj_w_kh_bf16"], kept_pb.reshape(M, H)
    )                                                                 # (M, H) f32
    sequence_unmasked = y.reshape(B, L, H)

    # --- mask in original patch order ---
    mask = jnp.ones((B, N), dtype=jnp.float32)
    mask = mask.at[:, :len_keep].set(0.0)
    mask = jnp.take_along_axis(mask, ids_restore, axis=1)

    # --- CLS token + its position embedding, prepend ---
    cls_token = params["cls_token"] + pos_full[:, :1, :]              # (1, 1, H)
    cls_tokens = jnp.broadcast_to(cls_token, (B, 1, H))
    out = jnp.concatenate([cls_tokens, sequence_unmasked], axis=1)
    return out, mask, ids_restore


# ----------------------------------------------------------------------------
# Deterministic parameter construction (mirrors module __init__ shapes)
# ----------------------------------------------------------------------------
def init_params(key, cfg):
    C, P, H = cfg["num_channels"], cfg["patch_size"], cfg["hidden_size"]
    N = cfg["num_patches"]
    K = C * P * P * P
    k_w, k_b, k_cls = jax.random.split(key, 3)

    # Conv3d weight (H, C, P, P, P) with xavier_uniform; fan_in=C*P^3, fan_out=H*P^3
    fan_in, fan_out = C * P ** 3, H * P ** 3
    bound = float(np.sqrt(6.0 / (fan_in + fan_out)))
    w = jax.random.uniform(k_w, (H, C, P, P, P), jnp.float32, -bound, bound)
    w_kh = w.reshape(H, K).T                                          # (K, H)

    # Conv3d bias: PyTorch default uniform(-1/sqrt(fan_in), 1/sqrt(fan_in))
    bb = 1.0 / np.sqrt(fan_in)
    b = jax.random.uniform(k_b, (H,), jnp.float32, -bb, bb)

    # cls token ~ Normal(0, initializer_range)
    cls_token = cfg["initializer_range"] * jax.random.normal(k_cls, (1, 1, H), jnp.float32)

    # fixed sincos position embeddings, zeros row for CLS
    pos = get_1d_sincos_pos_embed_from_grid(H, np.arange(N, dtype=np.float32))
    pos = np.concatenate([np.zeros((1, H), np.float32), pos], axis=0)[None]   # (1, N+1, H)

    return {
        "proj_w_kh_bf16": w_kh.astype(jnp.bfloat16),   # cast once at init
        "proj_b": b,
        "cls_token": cls_token,
        "position_embeddings": jnp.asarray(pos),
    }


if __name__ == "__main__":
    cfg = {
        "mri_size": 16,
        "patch_size": 4,
        "num_channels": 4,
        "hidden_size": 32,
        "mask_ratio": 0.75,
        "initializer_range": 0.02,
    }
    cfg["num_patches"] = (cfg["mri_size"] // cfg["patch_size"]) ** 3   # = 64

    key = jax.random.PRNGKey(0)
    k_params, k_x, k_noise = jax.random.split(key, 3)

    params = init_params(k_params, cfg)

    B = 2
    mri_values = jax.random.normal(
        k_x, (B, cfg["num_channels"], cfg["mri_size"], cfg["mri_size"], cfg["mri_size"]),
        jnp.float32,
    )
    noise = jax.random.uniform(k_noise, (B, cfg["num_patches"]), jnp.float32)

    embeddings, mask, ids_restore = mri_mae_embeddings_forward(mri_values, params, cfg, noise)
    jax.block_until_ready((embeddings, mask, ids_restore))

    len_keep = int(cfg["num_patches"] * (1 - cfg["mask_ratio"]))
    assert embeddings.shape == (B, len_keep + 1, cfg["hidden_size"])
    assert mask.shape == (B, cfg["num_patches"])
    assert ids_restore.shape == (B, cfg["num_patches"])
    assert bool(jnp.all(jnp.isfinite(embeddings)))
    print("KERNEL_OK")
</pallas_src>

<mosaic_0001>
module attributes {stable_mosaic.version = 11 : i64} {
  func.func @_proj_add_kernel(%arg0: i32, %arg1: i32, %arg2: memref<16x256xbf16, #tpu.memory_space<vmem>>, %arg3: memref<256x32xbf16, #tpu.memory_space<vmem>>, %arg4: memref<16x32xbf16, #tpu.memory_space<vmem>>, %arg5: memref<16x32xf32, #tpu.memory_space<vmem>>, %arg6: memref<16x32xf32, #tpu.memory_space<vmem>>) attributes {dimension_semantics = [#tpu.dimension_semantics<parallel>, #tpu.dimension_semantics<arbitrary>], iteration_bounds = array<i64: 2, 1>, scalar_prefetch = 0 : i64, scratch_operands = 1 : i64, tpu.core_type = #tpu.core_type<tc>, window_params = [{transform_indices = @transform_0, window_bounds = array<i64: 16, 256>}, {transform_indices = @transform_1, window_bounds = array<i64: 256, 32>}, {transform_indices = @transform_2, window_bounds = array<i64: 16, 32>}, {transform_indices = @transform_3, window_bounds = array<i64: 16, 32>}]} {
    %c0_i32 = arith.constant 0 : i32
    %0 = arith.cmpi eq, %arg1, %c0_i32 : i32
    %1 = arith.extui %0 : i1 to i32
    %c0_i32_0 = arith.constant 0 : i32
    %2 = arith.cmpi ne, %1, %c0_i32_0 : i32
    scf.if %2 {
      %cst_10 = arith.constant 0.000000e+00 : f32
      %12 = vector.broadcast %cst_10 : f32 to vector<16x32xf32>
      %c0_11 = arith.constant 0 : index
      %c0_12 = arith.constant 0 : index
      %13 = vector.load %arg6[%c0_11, %c0_12] : memref<16x32xf32, #tpu.memory_space<vmem>>, vector<16x32xf32>
      tpu.vector_store %arg6[%c0_11, %c0_12], %12 {strides = array<i32>} : memref<16x32xf32, #tpu.memory_space<vmem>>, vector<16x32xf32>,
    } else {
    }
    %c0 = arith.constant 0 : index
    %c0_1 = arith.constant 0 : index
    %3 = vector.load %arg6[%c0, %c0_1] : memref<16x32xf32, #tpu.memory_space<vmem>>, vector<16x32xf32>
    %c0_2 = arith.constant 0 : index
    %c0_3 = arith.constant 0 : index
    %4 = vector.load %arg2[%c0_2, %c0_3] : memref<16x256xbf16, #tpu.memory_space<vmem>>, vector<16x256xbf16>
    %c0_4 = arith.constant 0 : index
    %c0_5 = arith.constant 0 : index
    %5 = vector.load %arg3[%c0_4, %c0_5] : memref<256x32xbf16, #tpu.memory_space<vmem>>, vector<256x32xbf16>
    %cst = arith.constant dense<0.000000e+00> : vector<16x32xf32>
    %6 = tpu.matmul %4, %5, %cst {dimension_numbers = #tpu.dot_dimension_numbers<[1], [0], [0], [1], [0, 0, 1, 1], [], []>} : vector<16x256xbf16>, vector<256x32xbf16>, vector<16x32xf32> -> vector<16x32xf32>
    %7 = arith.addf %3, %6 : vector<16x32xf32>
    %c0_6 = arith.constant 0 : index
    %c0_7 = arith.constant 0 : index
    %8 = vector.load %arg6[%c0_6, %c0_7] : memref<16x32xf32, #tpu.memory_space<vmem>>, vector<16x32xf32>
    tpu.vector_store %arg6[%c0_6, %c0_7], %7 {strides = array<i32>} : memref<16x32xf32, #tpu.memory_space<vmem>>, vector<16x32xf32>,
    %c0_i32_8 = arith.constant 0 : i32
    %9 = arith.cmpi eq, %arg1, %c0_i32_8 : i32
    %10 = arith.extui %9 : i1 to i32
    %c0_i32_9 = arith.constant 0 : i32
    %11 = arith.cmpi ne, %10, %c0_i32_9 : i32
    scf.if %11 {
      %c0_10 = arith.constant 0 : index
      %c0_11 = arith.constant 0 : index
      %12 = vector.load %arg6[%c0_10, %c0_11] : memref<16x32xf32, #tpu.memory_space<vmem>>, vector<16x32xf32>
      %c0_12 = arith.constant 0 : index
      %c0_13 = arith.constant 0 : index
      %13 = vector.load %arg4[%c0_12, %c0_13] : memref<16x32xbf16, #tpu.memory_space<vmem>>, vector<16x32xbf16>
      %14 = arith.extf %13 : vector<16x32xbf16> to vector<16x32xf32>
      %15 = arith.addf %12, %14 : vector<16x32xf32>
      %c0_14 = arith.constant 0 : index
      %c0_15 = arith.constant 0 : index
      %16 = vector.load %arg5[%c0_14, %c0_15] : memref<16x32xf32, #tpu.memory_space<vmem>>, vector<16x32xf32>
      tpu.vector_store %arg5[%c0_14, %c0_15], %15 {strides = array<i32>} : memref<16x32xf32, #tpu.memory_space<vmem>>, vector<16x32xf32>,
    } else {
    }
    return
  }
  func.func @transform_0(%arg0: i32, %arg1: i32) -> (i32, i32) {
    %c0_i32 = arith.constant 0 : i32
    return %arg0, %arg1 : i32, i32
  }
  func.func @transform_1(%arg0: i32, %arg1: i32) -> (i32, i32) {
    %c0_i32 = arith.constant 0 : i32
    %c0_i32_0 = arith.constant 0 : i32
    return %arg1, %c0_i32 : i32, i32
  }
  func.func @transform_2(%arg0: i32, %arg1: i32) -> (i32, i32) {
    %c0_i32 = arith.constant 0 : i32
    %c0_i32_0 = arith.constant 0 : i32
    return %arg0, %c0_i32 : i32, i32
  }
  func.func @transform_3(%arg0: i32, %arg1: i32) -> (i32, i32) {
    %c0_i32 = arith.constant 0 : i32
    %c0_i32_0 = arith.constant 0 : i32
    return %arg0, %c0_i32 : i32, i32
  }
}

</mosaic_0001>

<llo_original>
// kernel: tpu_custom_call.1
$region0: #{tpu_custom_call.1}
  #allocation0 [shape = 'u32[]', space=smem, size = 0x4, offset = 0x4, fixed_abs, tag = 'smem constant byte address 0x4 - core index']
  #allocation1 [shape = 'u32[144,128]{1,0:T(1,128)}', space=vmem, size = 0x12000, scoped, tag = 'internal scratch']
  #allocation2 [shape = 'f32[16,32]{1,0:T(8,128)}', space=vmem, size = 0x2000, scoped, tag = 'scratch operand']
  %s0 = inlined_call_operand.vmem [shape: bf16[32,256], index: 0, kind: input, shape index: {}]
  %s1 = inlined_call_operand.vmem [shape: bf16[256,32], index: 1, kind: input, shape index: {}]
  %s2 = inlined_call_operand.vmem [shape: bf16[32,32], index: 2, kind: input, shape index: {}]
  %s3 = inlined_call_operand.hbm [shape: f32[32,32], index: 3, kind: output, shape index: {}]
  %s4 = sld [smem:[#allocation0]]
  $region53: #{tpu_custom_call.1} parent=0
    _
  %s6 = ssub.s32 1, %s4
  %s7 = scalar_select 0, %s6, %s4
  $region1: #{tpu_custom_call.1} parent=0
    #allocation3 [shape = 'u8[16384]{0}', space=vmem, size = 0x4000, scoped, tag = 'output window, operand 0']
    #allocation4 [shape = 's32[2]{0}', space=sflag, size = 0x8, scoped, tag = 'scoped memory for tpu_custom_call.1']
    %8 = vsyncpa [#allocation4], 0
    %s9 = scalar_lea.sflag [#allocation4], 1
    %10 = vsyncpa %s9, 0
    loop: start=0, step=1, limit=4
    $region2: #{tpu_custom_call.1} parent=1 // loop_pre_header
      _
    $region3: #{tpu_custom_call.1} parent=1 // loop_header
      %s12 = sphi 0, %s16
      %p13 = scmp.ge.s32.totalorder %s12, 4
      %s19 = sphi 0, %s31
      %s20 = sphi 0, %s27
      %s21 = sphi 0, %s19
      %s22 = sphi 0, %s20
      %s23 = sphi 0, %s21
      %s24 = sphi 0, %s22
      %s36 = sphi 0, %s38
      %s39 = sphi 0, %s36
      %s40 = sphi 0, %s39
      %s56 = sphi 0, %s40
      %s62 = sphi 0, %s64
      %s65 = sphi 0, %s62
      %s66 = sphi 0, %s65
      %s82 = sphi 0, %s66
      %s88 = sphi 0, %s90
      %s91 = sphi 0, %s88
      %s92 = sphi 0, %s91
      %s108 = sphi 0, %s92
      %s114 = sphi 0, %s116
      %s117 = sphi 0, %s114
      %s118 = sphi 0, %s117
      %s134 = sphi 0, %s118
    $region4: #{tpu_custom_call.1} parent=1 // loop_header_branch
      %15 = sbr.rel (%p13) target = $region8
    $region5: #{tpu_custom_call.1} parent=1 // loop_body
      %s17 = ssub.s32 %s12, 1
      %s18 = ssub.s32 %s12, 2
      %s25 = sadd.s32 1, %s20
      %p26 = scmp.ge.s32.totalorder %s25, 1
      %s27 = scalar_select %p26, 0, %s25
      %s28 = sadd.s32 1, %s19
      %s29 = scalar_select %p26, %s28, %s19
      %p30 = scmp.ge.s32.totalorder %s29, 2
      %s31 = scalar_select %p30, 0, %s29
      %s32 = ssub.s32 %s19, %s31
      %s33 = ssub.s32 %s20, %s27
      %s34 = sor.u32 %s32, %s33
      %p35 = scmp.eq.s32.totalorder %s34, 0
      %s37 = sadd.s32 %s36, 1
      %s38 = scalar_select %p35, %s36, %s37
      %p41 = pneg %p35
      %p42 = scmp.eq.s32.totalorder %s12, 1
      %p43 = por %p41, %p42
      %p44 = scmp.ne.s32.totalorder %s36, %s39
      %p45 = scmp.eq.s32.totalorder %s12, 0
      %p46 = por %p44, %p45
      %p47 = scmp.ne.s32.totalorder %s36, %s39
      %p48 = scmp.eq.s32.totalorder %s17, 1
      %p49 = por %p47, %p48
      %p50 = scmp.ne.s32.totalorder %s39, %s40
      %p51 = scmp.eq.s32.totalorder %s17, 0
      %p52 = por %p50, %p51
      %p53 = scmp.ne.s32.totalorder %s39, %s40
      %p54 = scmp.eq.s32.totalorder %s18, 1
      %p55 = por %p53, %p54
      %p57 = scmp.ne.s32.totalorder %s40, %s56
      %p58 = scmp.eq.s32.totalorder %s18, 0
      %p59 = por %p57, %p58
      %s60 = ssub.s32 %s20, %s27
      %p61 = scmp.eq.s32.totalorder %s60, 0
      %s63 = sadd.s32 %s62, 1
      %s64 = scalar_select %p61, %s62, %s63
      %p67 = pneg %p61
      %p68 = scmp.eq.s32.totalorder %s12, 1
      %p69 = por %p67, %p68
      %p70 = scmp.ne.s32.totalorder %s62, %s65
      %p71 = scmp.eq.s32.totalorder %s12, 0
      %p72 = por %p70, %p71
      %p73 = scmp.ne.s32.totalorder %s62, %s65
      %p74 = scmp.eq.s32.totalorder %s17, 1
      %p75 = por %p73, %p74
      %p76 = scmp.ne.s32.totalorder %s65, %s66
      %p77 = scmp.eq.s32.totalorder %s17, 0
      %p78 = por %p76, %p77
      %p79 = scmp.ne.s32.totalorder %s65, %s66
      %p80 = scmp.eq.s32.totalorder %s18, 1
      %p81 = por %p79, %p80
      %p83 = scmp.ne.s32.totalorder %s66, %s82
      %p84 = scmp.eq.s32.totalorder %s18, 0
      %p85 = por %p83, %p84
      %s86 = ssub.s32 %s19, %s31
      %p87 = scmp.eq.s32.totalorder %s86, 0
      %s89 = sadd.s32 %s88, 1
      %s90 = scalar_select %p87, %s88, %s89
      %p93 = pneg %p87
      %p94 = scmp.eq.s32.totalorder %s12, 1
      %p95 = por %p93, %p94
      %p96 = scmp.ne.s32.totalorder %s88, %s91
      %p97 = scmp.eq.s32.totalorder %s12, 0
      %p98 = por %p96, %p97
      %p99 = scmp.ne.s32.totalorder %s88, %s91
      %p100 = scmp.eq.s32.totalorder %s17, 1
      %p101 = por %p99, %p100
      %p102 = scmp.ne.s32.totalorder %s91, %s92
      %p103 = scmp.eq.s32.totalorder %s17, 0
      %p104 = por %p102, %p103
      %p105 = scmp.ne.s32.totalorder %s91, %s92
      %p106 = scmp.eq.s32.totalorder %s18, 1
      %p107 = por %p105, %p106
      %p109 = scmp.ne.s32.totalorder %s92, %s108
      %p110 = scmp.eq.s32.totalorder %s18, 0
      %p111 = por %p109, %p110
      %s112 = ssub.s32 %s19, %s31
      %p113 = scmp.eq.s32.totalorder %s112, 0
      %s115 = sadd.s32 %s114, 1
      %s116 = scalar_select %p113, %s114, %s115
      %p119 = pneg %p113
      %p120 = scmp.eq.s32.totalorder %s12, 1
      %p121 = por %p119, %p120
      %p122 = scmp.ne.s32.totalorder %s114, %s117
      %p123 = scmp.eq.s32.totalorder %s12, 0
      %p124 = por %p122, %p123
      %p125 = scmp.ne.s32.totalorder %s114, %s117
      %p126 = scmp.eq.s32.totalorder %s17, 1
      %p127 = por %p125, %p126
      %p128 = scmp.ne.s32.totalorder %s117, %s118
      %p129 = scmp.eq.s32.totalorder %s17, 0
      %p130 = por %p128, %p129
      %p131 = scmp.ne.s32.totalorder %s117, %s118
      %p132 = scmp.eq.s32.totalorder %s18, 1
      %p133 = por %p131, %p132
      %p135 = scmp.ne.s32.totalorder %s118, %s134
      %p136 = scmp.eq.s32.totalorder %s18, 0
      %p137 = por %p135, %p136
      %p138 = scmp.le.s32.totalorder 1, %s12
      %p139 = scmp.lt.s32.totalorder %s12, 3
      %p140 = pnand %p138, %p139
      %p141 = pneg %p140
      // Predicated region
      $region9: #{tpu_custom_call.1} parent=5 // pred_check
        _
      $region10: #{tpu_custom_call.1} parent=5 // pred_check_branch
        %143 = sbr.rel (%p140) target = $region12
      $region11: #{tpu_custom_call.1} parent=5 // pred_region
        %s144 = ssub.s32 %s12, 1
        // Predicated region
        $region13: #{tpu_custom_call.1} parent=11 // pred_check
          %p145 = pneg %p78
        $region14: #{tpu_custom_call.1} parent=11 // pred_check_branch
          %147 = sbr.rel (%p145) target = $region16
        $region15: #{tpu_custom_call.1} parent=11 // pred_region
          %s148 = smul.u32 32, %s22
          %p149 = scmp.lt.s32.totalorder %s148, 31
          %s150 = scalar_select %p149, %s148, 31
          %s151 = smul.addr %s150, 4
          %s152 = scalar_lea.vmem %s1, %s151
          %s153 = smul.u32 32, %s22
        $region16: #{tpu_custom_call.1} parent=11 // pred_fallthru
          _
      $region12: #{tpu_custom_call.1} parent=5 // pred_fallthru
        _
      %p154 = scmp.lt.s32.totalorder %s12, 2
      // Predicated region
      $region17: #{tpu_custom_call.1} parent=5 // pred_check
        %p155 = pneg %p154
      $region18: #{tpu_custom_call.1} parent=5 // pred_check_branch
        %157 = sbr.rel (%p155) target = $region20
      $region19: #{tpu_custom_call.1} parent=5 // pred_region
        // Predicated region
        $region21: #{tpu_custom_call.1} parent=19 // pred_check
          %p158 = pneg %p46
        $region22: #{tpu_custom_call.1} parent=19 // pred_check_branch
          %160 = sbr.rel (%p158) target = $region24
        $region23: #{tpu_custom_call.1} parent=19 // pred_region
          %s161 = smul.u32 2, %s19
          %s162 = smul.u32 2, %s20
          %p163 = scmp.lt.s32.totalorder %s161, 3
          %s164 = scalar_select %p163, %s161, 3
          %p165 = scmp.lt.s32.totalorder %s162, 1
          %s166 = scalar_select %p165, %s162, 1
          %s167 = smul.addr %s164, 2
          %s168 = sadd.s32 %s166, %s167
          %s169 = smul.addr %s168, 4
          %s170 = scalar_lea.vmem %s0, %s169
          %s171 = smul.u32 2, %s19
          %s172 = smul.u32 2, %s20
        $region24: #{tpu_custom_call.1} parent=19 // pred_fallthru
          _
        // Predicated region
        $region25: #{tpu_custom_call.1} parent=19 // pred_check
          %p173 = pneg %p98
        $region26: #{tpu_custom_call.1} parent=19 // pred_check_branch
          %175 = sbr.rel (%p173) target = $region28
        $region27: #{tpu_custom_call.1} parent=19 // pred_region
          %s176 = smul.u32 2, %s19
          %p177 = scmp.lt.s32.totalorder %s176, 3
          %s178 = scalar_select %p177, %s176, 3
          %s179 = smul.addr %s178, 4
          %s180 = scalar_lea.vmem %s2, %s179
          %s181 = smul.u32 2, %s19
        $region28: #{tpu_custom_call.1} parent=19 // pred_fallthru
          _
      $region20: #{tpu_custom_call.1} parent=5 // pred_fallthru
        _
      %p182 = scmp.le.s32.totalorder 1, %s12
      %p183 = scmp.lt.s32.totalorder %s12, 3
      %p184 = pnand %p182, %p183
      %p185 = pneg %p184
      // Predicated region
      $region29: #{tpu_custom_call.1} parent=5 // pred_check
        _
      $region30: #{tpu_custom_call.1} parent=5 // pred_check_branch
        %187 = sbr.rel (%p184) target = $region32
      $region31: #{tpu_custom_call.1} parent=5 // pred_region
        %s188 = ssub.s32 %s12, 1
        %s189 = smul.u32 2, %s21
        %s190 = smul.u32 2, %s22
        %p191 = scmp.lt.s32.totalorder %s189, 3
        %s192 = scalar_select %p191, %s189, 3
        %p193 = scmp.lt.s32.totalorder %s190, 1
        %s194 = scalar_select %p193, %s190, 1
        %s195 = smul.addr %s192, 2
        %s196 = sadd.s32 %s194, %s195
        %s197 = smul.addr %s196, 4
        %s198 = scalar_lea.vmem %s0, %s197
        %p199 = pneg %p52
        %p200 = pneg %p49
        %s201 = smul.u32 32, %s22
        %p202 = scmp.lt.s32.totalorder %s201, 31
        %s203 = scalar_select %p202, %s201, 31
        %s204 = smul.addr %s203, 4
        %s205 = scalar_lea.vmem %s1, %s204
        %p206 = pneg %p78
        %p207 = pneg %p75
        %s208 = smul.u32 2, %s21
        %p209 = scmp.lt.s32.totalorder %s208, 3
        %s210 = scalar_select %p209, %s208, 3
        %s211 = smul.addr %s210, 4
        %s212 = scalar_lea.vmem %s2, %s211
        %p213 = pneg %p104
        %p214 = pneg %p101
        %p215 = pneg %p130
        %p216 = pneg %p127
        %s217 = sand.u32 %s117, 1
        %s218 = scalar_lea.sflag [#allocation4], %s217
        %s219 = sand.u32 %s117, 1
        %s220 = smul.addr %s219, 16
        %s221 = scalar_lea.vmem [#allocation3], %s220
        %s222 = smul.u32 2, %s21
        %s223 = smul.u32 2, %s22
        %p224 = scmp.lt.s32.totalorder %s222, 3
        %s225 = scalar_select %p224, %s222, 3
        %p226 = scmp.lt.s32.totalorder %s223, 1
        %s227 = scalar_select %p226, %s223, 1
        %s228 = smul.addr %s225, 2
        %s229 = sadd.s32 %s227, %s228
        %s230 = smul.addr %s229, 4
        %s231 = scalar_lea.vmem %s0, %s230
        %s232 = smul.u32 2, %s21
        %s233 = smul.u32 2, %s22
        %s234 = smul.u32 32, %s22
        %p235 = scmp.lt.s32.totalorder %s234, 31
        %s236 = scalar_select %p235, %s234, 31
        %s237 = smul.addr %s236, 4
        %s238 = scalar_lea.vmem %s1, %s237
        %s239 = smul.u32 32, %s22
        %s240 = smul.u32 2, %s21
        %p241 = scmp.lt.s32.totalorder %s240, 3
        %s242 = scalar_select %p241, %s240, 3
        %s243 = smul.addr %s242, 4
        %s244 = scalar_lea.vmem %s2, %s243
        %s245 = smul.u32 2, %s21
        %s246 = smul.u32 2, %s21
        %p248 = scmp.eq.s32.totalorder %s22, 0
        // Predicated region
        $region33: #{tpu_custom_call.1} parent=31 // pred_check
          %p249 = pneg %p248
        $region34: #{tpu_custom_call.1} parent=31 // pred_check_branch
          %251 = sbr.rel (%p249) target = $region36
        $region35: #{tpu_custom_call.1} parent=31 // pred_region
          %vm252 = vcmask 261120
          %253 = vst.msk [vmem:[#allocation2] sm:$0xff] %vm252, 0.0
          %254 = vst.msk [vmem:[#allocation2 + $0x8] sm:$0xff] %vm252, 0.0
        $region36: #{tpu_custom_call.1} parent=31 // pred_fallthru
          _
        %v255 = vld [vmem:[#allocation2] sm:$0xff]
        %v256 = vld [vmem:[#allocation2 + $0x8] sm:$0xff]
        %v257 = vld [vmem:[%s231] sm:$0xff]
        %v258 = vld [vmem:[%s231 + $0x8] sm:$0xff]
        %v259 = vld [vmem:[%s238] sm:$0xf]
        %v260 = vld [vmem:[%s238 + $0x4] sm:$0xf]
        %v261 = vld [vmem:[%s238 + $0x8] sm:$0xf]
        %v262 = vld [vmem:[%s238 + $0xc] sm:$0xf]
        %v263 = vld [vmem:[%s238 + $0x10] sm:$0xf]
        %v264 = vld [vmem:[%s238 + $0x14] sm:$0xf]
        %v265 = vld [vmem:[%s238 + $0x18] sm:$0xf]
        %v266 = vld [vmem:[%s238 + $0x1c] sm:$0xf]
        %v267 = vld [vmem:[%s238 + $0x20] sm:$0xf]
        %v268 = vld [vmem:[%s238 + $0x24] sm:$0xf]
        %v269 = vld [vmem:[%s238 + $0x28] sm:$0xf]
        %v270 = vld [vmem:[%s238 + $0x2c] sm:$0xf]
        %v271 = vld [vmem:[%s238 + $0x30] sm:$0xf]
        %v272 = vld [vmem:[%s238 + $0x34] sm:$0xf]
        %v273 = vld [vmem:[%s238 + $0x38] sm:$0xf]
        %v274 = vld [vmem:[%s238 + $0x3c] sm:$0xf]
        %v275 = vld [vmem:[%s238 + $0x40] sm:$0xf]
        %v276 = vld [vmem:[%s238 + $0x44] sm:$0xf]
        %v277 = vld [vmem:[%s238 + $0x48] sm:$0xf]
        %v278 = vld [vmem:[%s238 + $0x4c] sm:$0xf]
        %v279 = vld [vmem:[%s238 + $0x50] sm:$0xf]
        %v280 = vld [vmem:[%s238 + $0x54] sm:$0xf]
        %v281 = vld [vmem:[%s238 + $0x58] sm:$0xf]
        %v282 = vld [vmem:[%s238 + $0x5c] sm:$0xf]
        %v283 = vld [vmem:[%s238 + $0x60] sm:$0xf]
        %v284 = vld [vmem:[%s238 + $0x64] sm:$0xf]
        %v285 = vld [vmem:[%s238 + $0x68] sm:$0xf]
        %v286 = vld [vmem:[%s238 + $0x6c] sm:$0xf]
        %v287 = vld [vmem:[%s238 + $0x70] sm:$0xf]
        %v288 = vld [vmem:[%s238 + $0x74] sm:$0xf]
        %v289 = vld [vmem:[%s238 + $0x78] sm:$0xf]
        %v290 = vld [vmem:[%s238 + $0x7c] sm:$0xf]
        %v293 = vunpack.c.l.b16 %v257
        %v294 = vunpack.c.h.b16 %v257
        %v295 = vunpack.c.l.b16 %v258
        %v296 = vunpack.c.h.b16 %v258
        %v297 = vpack.c.b16 %v295, %v293
        %v298 = vpack.c.b16 %v296, %v294
        %v333 = vunpack.c.l.b16 %v259
        %v334 = vunpack.c.l.b16 %v260
        %v335 = vunpack.c.l.b16 %v261
        %v336 = vunpack.c.l.b16 %v262
        %v337 = vunpack.c.l.b16 %v263
        %v338 = vunpack.c.l.b16 %v264
        %v339 = vunpack.c.l.b16 %v265
        %v340 = vunpack.c.l.b16 %v266
        %v341 = vunpack.c.l.b16 %v267
        %v342 = vunpack.c.l.b16 %v268
        %v343 = vunpack.c.l.b16 %v269
        %v344 = vunpack.c.l.b16 %v270
        %v345 = vunpack.c.l.b16 %v271
        %v346 = vunpack.c.l.b16 %v272
        %v347 = vunpack.c.l.b16 %v273
        %v348 = vunpack.c.l.b16 %v274
        %v349 = vunpack.c.l.b16 %v275
        %v350 = vunpack.c.l.b16 %v276
        %v351 = vunpack.c.l.b16 %v277
        %v352 = vunpack.c.l.b16 %v278
        %v353 = vunpack.c.l.b16 %v279
        %v354 = vunpack.c.l.b16 %v280
        %v355 = vunpack.c.l.b16 %v281
        %v356 = vunpack.c.l.b16 %v282
        %v357 = vunpack.c.l.b16 %v283
        %v358 = vunpack.c.l.b16 %v284
        %v359 = vunpack.c.l.b16 %v285
        %v360 = vunpack.c.l.b16 %v286
        %v361 = vunpack.c.l.b16 %v287
        %v362 = vunpack.c.l.b16 %v288
        %v363 = vunpack.c.l.b16 %v289
        %v364 = vunpack.c.l.b16 %v290
        %v365 = vpack.c.b16 %v334, %v333
        %v366 = vpack.c.b16 %v336, %v335
        %v367 = vpack.c.b16 %v338, %v337
        %v368 = vpack.c.b16 %v340, %v339
        %v369 = vpack.c.b16 %v342, %v341
        %v370 = vpack.c.b16 %v344, %v343
        %v371 = vpack.c.b16 %v346, %v345
        %v372 = vpack.c.b16 %v348, %v347
        %v373 = vpack.c.b16 %v350, %v349
        %v374 = vpack.c.b16 %v352, %v351
        %v375 = vpack.c.b16 %v354, %v353
        %v376 = vpack.c.b16 %v356, %v355
        %v377 = vpack.c.b16 %v358, %v357
        %v378 = vpack.c.b16 %v360, %v359
        %v379 = vpack.c.b16 %v362, %v361
        %v380 = vpack.c.b16 %v364, %v363
        %397 = vmatprep.subr.bf16.mxu0 0
        %398 = vmatpush1.bf16.msra.mxu0 %v365
        %399 = vmatprep.subr.bf16.mxu0 0
        %400 = vmatpush1.bf16.msra.mxu0 %v366
        %401 = vmatprep.subr.bf16.mxu0 0
        %402 = vmatpush1.bf16.msra.mxu0 %v367
        %403 = vmatprep.subr.bf16.mxu0 0
        %404 = vmatpush1.bf16.msra.mxu0 %v368
        %405 = vmatprep.subr.bf16.mxu0 0
        %406 = vmatpush1.bf16.msra.mxu0 %v369
        %407 = vmatprep.subr.bf16.mxu0 0
        %408 = vmatpush1.bf16.msra.mxu0 %v370
        %409 = vmatprep.subr.bf16.mxu0 0
        %410 = vmatpush1.bf16.msra.mxu0 %v371
        %411 = vmatprep.subr.bf16.mxu0 0
        %412 = vmatpush1.bf16.msra.mxu0 %v372
        %413 = vmatprep.subr.bf16.mxu0 0
        %414 = vmatpush1.bf16.msra.mxu0 %v373
        %415 = vmatprep.subr.bf16.mxu0 0
        %416 = vmatpush1.bf16.msra.mxu0 %v374
        %417 = vmatprep.subr.bf16.mxu0 0
        %418 = vmatpush1.bf16.msra.mxu0 %v375
        %419 = vmatprep.subr.bf16.mxu0 0
        %420 = vmatpush1.bf16.msra.mxu0 %v376
        %421 = vmatprep.subr.bf16.mxu0 0
        %422 = vmatpush1.bf16.msra.mxu0 %v377
        %423 = vmatprep.subr.bf16.mxu0 0
        %424 = vmatpush1.bf16.msra.mxu0 %v378
        %425 = vmatprep.subr.bf16.mxu0 0
        %426 = vmatpush1.bf16.msra.mxu0 %v379
        %427 = vmatprep.subr.bf16.mxu0 0
        %428 = vmatpush1.bf16.msra.mxu0 %v380
        %429 = vmatprep.mubr.bf16.mxu0 %v298
        %430 = vmatmul.mubr.bf16.gmra.mrb[0].mxu0 %v297
        %v431 = vpop.f32.mrb[0].mxu0
        %v432 = vadd.f32 0.0, %v431
        %v433 = vpop.f32.mrb[0].mxu0
        %v434 = vpop.f32.mrb[0].mxu0
        %v435 = vadd.f32 0.0, %v434
        %v436 = vpop.f32.mrb[0].mxu0
        %437 = vdwg.mxu0
        %v438 = vadd.f32 %v255, %v432
        %v439 = vadd.f32 %v256, %v435
        %vm440 = vcmask 261120
        %441 = vst.msk [vmem:[#allocation2] sm:$0xff] %vm440, %v438
        %442 = vst.msk [vmem:[#allocation2 + $0x8] sm:$0xff] %vm440, %v439
        // Predicated region
        $region37: #{tpu_custom_call.1} parent=31 // pred_check
          %p443 = pneg %p248
        $region38: #{tpu_custom_call.1} parent=31 // pred_check_branch
          %445 = sbr.rel (%p443) target = $region40
        $region39: #{tpu_custom_call.1} parent=31 // pred_region
          %v446 = vld [vmem:[#allocation2] sm:$0xff]
          %v447 = vld [vmem:[#allocation2 + $0x8] sm:$0xff]
          %v448 = vld [vmem:[%s244] sm:$0xf]
          %v449 = vld [vmem:[%s244 + $0x4] sm:$0xf]
          %v450 = vunpack.c.l.bf16 %v448
          %v451 = vunpack.c.l.bf16 %v449
          %v452 = vadd.f32 %v446, %v450
          %v453 = vadd.f32 %v447, %v451
          %454 = vst.msk [vmem:[%s221] sm:$0xff] %vm440, %v452
          %455 = vst.msk [vmem:[%s221 + $0x8] sm:$0xff] %vm440, %v453
        $region40: #{tpu_custom_call.1} parent=31 // pred_fallthru
          _
        %s456 = sand.u32 %s117, 1
        %s457 = scalar_lea.sflag [#allocation4], %s456
        %s458 = sand.u32 %s117, 1
        %s459 = smul.addr %s458, 16
        %s460 = scalar_lea.vmem [#allocation3], %s459
        // Predicated region
        $region41: #{tpu_custom_call.1} parent=31 // pred_check
          %p461 = pneg %p127
        $region42: #{tpu_custom_call.1} parent=31 // pred_check_branch
          %463 = sbr.rel (%p461) target = $region44
        $region43: #{tpu_custom_call.1} parent=31 // pred_region
          %s464 = smul.u32 2, %s21
          %s466 = ssub.s32 256, 256
          %467 = vsyncadd %s457, %s466
          %s468 = smul.addr %s464, 128
          %s469 = scalar_lea.hbm %s3, %s468
          %s470 = sshll.u32 %s460, 4
          %s471 = int_to_ptr.vmem [resolvable:$true] %s470
          %476 = dma.vmem_to_hbm [thread:$0]  %s471, 256, %s469, %s457, 128, 128, 8
        $region44: #{tpu_custom_call.1} parent=31 // pred_fallthru
          _
      $region32: #{tpu_custom_call.1} parent=5 // pred_fallthru
        _
      %p477 = scmp.le.s32.totalorder 2, %s12
      // Predicated region
      $region45: #{tpu_custom_call.1} parent=5 // pred_check
        %p478 = pneg %p477
      $region46: #{tpu_custom_call.1} parent=5 // pred_check_branch
        %480 = sbr.rel (%p478) target = $region48
      $region47: #{tpu_custom_call.1} parent=5 // pred_region
        %s481 = ssub.s32 %s12, 2
        // Predicated region
        $region49: #{tpu_custom_call.1} parent=47 // pred_check
          %p482 = pneg %p133
        $region50: #{tpu_custom_call.1} parent=47 // pred_check_branch
          %484 = sbr.rel (%p482) target = $region52
        $region51: #{tpu_custom_call.1} parent=47 // pred_region
          %s485 = sand.u32 %s118, 1
          %s486 = scalar_lea.sflag [#allocation4], %s485
          %s487 = sand.u32 %s118, 1
          %s488 = smul.addr %s487, 16
          %s489 = scalar_lea.vmem [#allocation3], %s488
          %490 = dma.done %s486, 256
        $region52: #{tpu_custom_call.1} parent=47 // pred_fallthru
          _
      $region48: #{tpu_custom_call.1} parent=5 // pred_fallthru
        _
    $region6: #{tpu_custom_call.1} parent=1 // loop_footer
      %s16 = sadd.s32 1, %s12
    $region7: #{tpu_custom_call.1} parent=1 // loop_footer_branch
      %11 = sbr.rel target = $region3
    $region8: #{tpu_custom_call.1} parent=1 // loop_exit
      _
    %491 = vsyncpa [#allocation4], 1
    %s492 = scalar_lea.sflag [#allocation4], 1
    %493 = vsyncpa %s492, 1

</llo_original>
